<compile_context>
chip_gen: v7x
topology: tpu7x:2x2x1
jax: 0.10.0
libtpu: 0.0.40
codegen_flags: <defaults>
</compile_context>

<pallas_src>
import functools

import jax
import jax.numpy as jnp
from jax import lax
from jax.experimental import pallas as pl
from jax.experimental.pallas import tpu as pltpu

_LANES = 128


def _round_up(a: int, b: int) -> int:
    return ((a + b - 1) // b) * b


def _cdiv(a: int, b: int) -> int:
    return -(-a // b)


def _sublane_multiple(*dtypes) -> int:
    """Minimum row multiple for a legal (rows, 128) block across dtypes."""
    table = {4: 8, 2: 16, 1: 32}
    return max(table.get(jnp.dtype(d).itemsize, 8) for d in dtypes)


def _make_ssd_kernel(tm: int, rows: int):
    """Build the SSD-accumulation kernel.

    Accumulates a lane-wise (8, 128) partial-sum slab of sum((x-y)^2) over the
    whole grid.  `tm` (block rows) and `rows` (valid rows) are static, so the
    ragged-edge mask is only emitted when it is actually needed.
    """
    ragged = (rows % tm) != 0

    def kernel(x_ref, y_ref, o_ref):
        step = pl.program_id(0)

        @pl.when(step == 0)
        def _():
            o_ref[...] = jnp.zeros_like(o_ref)

        d = x_ref[...].astype(jnp.float32) - y_ref[...].astype(jnp.float32)
        sq = d * d
        if ragged:
            # The last block extends past the valid rows; Pallas leaves the
            # out-of-bounds rows of that edge block unspecified, so zero them
            # before accumulating (cheap VPU work, fully hidden under the DMA).
            row_ids = step * tm + lax.broadcasted_iota(jnp.int32, (tm, _LANES), 0)
            sq = jnp.where(row_ids < rows, sq, jnp.float32(0.0))
        # (tm,128) -> (tm//8, 8, 128), reduce the groups: sublane/lane parallel
        # adds only -- no cross-lane (XLU) work on the hot path.
        o_ref[...] += jnp.sum(sq.reshape(tm // 8, 8, _LANES), axis=0)

    return kernel


def _psnr_scalar_from_mse(mse):
    return jnp.float32(10.0) * jnp.log10(jnp.float32(1.0) / mse)


@functools.partial(jax.jit, static_argnames=("tile_rows", "min_kernel_elems"))
def _psnr_value(x, y, *, tile_rows: int, min_kernel_elems: int):
    assert x.shape == y.shape, "x and y must have the same shape"
    total = int(x.size)
    assert total > 0, "empty input"

    sub = _sublane_multiple(x.dtype, y.dtype)
    main = (total // _LANES) * _LANES          # lane-aligned prefix
    rows = main // _LANES

    # Small inputs: a fused XLA reduction beats the pallas_call dispatch cost.
    if total < min_kernel_elems or rows < sub:
        d = x.astype(jnp.float32) - y.astype(jnp.float32)
        return _psnr_scalar_from_mse(jnp.mean(d * d))

    xf = jnp.ravel(x)
    yf = jnp.ravel(y)

    # Ragged flat tail (< 128 elements): tiny, reduce it in the wrapper.  No
    # jnp.pad of the full inputs anywhere -> no extra read+write HBM pass.
    rem = total - main
    if rem:
        dt = xf[main:].astype(jnp.float32) - yf[main:].astype(jnp.float32)
        tail_ssd = jnp.sum(dt * dt)
        x2 = xf[:main].reshape(rows, _LANES)
        y2 = yf[:main].reshape(rows, _LANES)
    else:
        tail_ssd = jnp.float32(0.0)
        x2 = xf.reshape(rows, _LANES)
        y2 = yf.reshape(rows, _LANES)

    # Block sizing: as large as possible (amortize the ~0.35us/step overhead)
    # while keeping >= ~4 grid steps for pipelining on mid-size inputs, rounded
    # to the dtype sublane multiple and never larger than the array itself
    # (the ragged row edge is handled by in-kernel masking, not padding).
    tm = min(int(tile_rows), _round_up(max(_cdiv(rows, 4), 512), sub))
    tm = min(tm, max(sub, (rows // sub) * sub))
    steps = _cdiv(rows, tm)

    # VMEM: 2 inputs x 2 pipeline buffers x block + f32 temporaries + headroom,
    # capped at 48 MiB so v7x (64 MiB physical) keeps room for Mosaic scratch.
    in_block_bytes = tm * _LANES * (x2.dtype.itemsize + y2.dtype.itemsize)
    vmem_limit = int(min(48 << 20,
                         max(16 << 20,
                             4 * in_block_bytes + 2 * tm * _LANES * 4 + (2 << 20))))

    # TODO(synk): on v7x, shard the step axis across the 2 TensorCores
    # (pltpu.CORE_PARALLEL / pl.core_map) once verified in a trace; plain
    # "parallel" does not reliably split and is pure overhead on v5e/v6e.
    partials = pl.pallas_call(
        _make_ssd_kernel(tm, rows),
        out_shape=jax.ShapeDtypeStruct((8, _LANES), jnp.float32),
        grid_spec=pltpu.PrefetchScalarGridSpec(
            num_scalar_prefetch=0,
            grid=(steps,),
            in_specs=[
                pl.BlockSpec((tm, _LANES), lambda i: (i, 0)),
                pl.BlockSpec((tm, _LANES), lambda i: (i, 0)),
            ],
            out_specs=pl.BlockSpec((8, _LANES), lambda i: (0, 0)),
        ),
        compiler_params=pltpu.CompilerParams(
            dimension_semantics=("arbitrary",),
            vmem_limit_bytes=vmem_limit,
        ),
    )(x2, y2)

    # Tiny epilogue: one cross-lane reduce of an (8,128) slab + log10.
    ssd = jnp.sum(partials, dtype=jnp.float32) + tail_ssd
    mse = ssd / jnp.float32(total)
    return _psnr_scalar_from_mse(mse)


def psnr(x, y, *, tile_rows: int = 8192, min_kernel_elems: int = 128 * 1024) -> float:
    """Compute PSNR between x and y (same shape, any shape/dtype)."""
    val = _psnr_value(x, y, tile_rows=int(tile_rows),
                      min_kernel_elems=int(min_kernel_elems))
    # PyTorch's .item() -> python float (mse == 0 -> +inf, matching torch).
    return float(val)


def psnr_ref(x, y) -> float:
    mse = jnp.mean((x.astype(jnp.float32) - y.astype(jnp.float32)) ** 2)
    return float(10.0 * jnp.log10(1.0 / mse))


if __name__ == "__main__":
    key = jax.random.PRNGKey(0)
    kx, kn, kx2, kn2 = jax.random.split(key, 4)

    # Small NCHW input (2,4,16,16) = 2048 elements = 16 rows x 128 lanes.
    x = jax.random.uniform(kx, (2, 4, 16, 16), dtype=jnp.float32)
    y = x + 0.05 * jax.random.normal(kn, (2, 4, 16, 16), dtype=jnp.float32)
    want = psnr_ref(x, y)

    # Force the Pallas kernel path on the small input (min_kernel_elems=0).
    got_kernel = psnr(x, y, min_kernel_elems=0)
    jax.block_until_ready(jnp.asarray(got_kernel))
    assert abs(got_kernel - want) < 1e-2, (got_kernel, want)

    # Default path (small-input jnp fallback) must agree too.
    got_default = psnr(x, y)
    assert abs(got_default - want) < 1e-2, (got_default, want)

    # Ragged case: total (22755) not a multiple of 128 and rows (177) not a
    # multiple of the tile -> exercises in-kernel row masking + wrapper tail.
    xr = jax.random.uniform(kx2, (3, 5, 37, 41), dtype=jnp.float32)
    yr = xr + 0.1 * jax.random.normal(kn2, (3, 5, 37, 41), dtype=jnp.float32)
    got_ragged = psnr(xr, yr, min_kernel_elems=0)
    jax.block_until_ready(jnp.asarray(got_ragged))
    want_ragged = psnr_ref(xr, yr)
    assert abs(got_ragged - want_ragged) < 1e-2, (got_ragged, want_ragged)

    print("KERNEL_OK")
</pallas_src>

<mosaic_0001>
module attributes {stable_mosaic.version = 11 : i64} {
  func.func @kernel(%arg0: i32, %arg1: memref<16x128xf32, #tpu.memory_space<vmem>>, %arg2: memref<16x128xf32, #tpu.memory_space<vmem>>, %arg3: memref<8x128xf32, #tpu.memory_space<vmem>>) attributes {dimension_semantics = [#tpu.dimension_semantics<arbitrary>], iteration_bounds = array<i64: 1>, scalar_prefetch = 0 : i64, scratch_operands = 0 : i64, tpu.core_type = #tpu.core_type<tc>, window_params = [{transform_indices = @transform_0, window_bounds = array<i64: 16, 128>}, {transform_indices = @transform_1, window_bounds = array<i64: 16, 128>}, {pipeline_mode = #tpu.pipeline_mode<synchronous>, transform_indices = @transform_2, window_bounds = array<i64: 8, 128>}]} {
    %c0_i32 = arith.constant 0 : i32
    %0 = arith.cmpi eq, %arg0, %c0_i32 : i32
    %1 = arith.extui %0 : i1 to i32
    %c0_i32_0 = arith.constant 0 : i32
    %2 = arith.cmpi ne, %1, %c0_i32_0 : i32
    scf.if %2 {
      %cst_8 = arith.constant 0.000000e+00 : f32
      %12 = vector.broadcast %cst_8 : f32 to vector<8x128xf32>
      %c0_9 = arith.constant 0 : index
      %c0_10 = arith.constant 0 : index
      %13 = vector.load %arg3[%c0_9, %c0_10] : memref<8x128xf32, #tpu.memory_space<vmem>>, vector<8x128xf32>
      tpu.vector_store %arg3[%c0_9, %c0_10], %12 {strides = array<i32>} : memref<8x128xf32, #tpu.memory_space<vmem>>, vector<8x128xf32>,
    } else {
    }
    %c0 = arith.constant 0 : index
    %c0_1 = arith.constant 0 : index
    %3 = vector.load %arg1[%c0, %c0_1] : memref<16x128xf32, #tpu.memory_space<vmem>>, vector<16x128xf32>
    %c0_2 = arith.constant 0 : index
    %c0_3 = arith.constant 0 : index
    %4 = vector.load %arg2[%c0_2, %c0_3] : memref<16x128xf32, #tpu.memory_space<vmem>>, vector<16x128xf32>
    %5 = arith.subf %3, %4 : vector<16x128xf32>
    %6 = arith.mulf %5, %5 : vector<16x128xf32>
    %c0_4 = arith.constant 0 : index
    %c0_5 = arith.constant 0 : index
    %7 = vector.load %arg3[%c0_4, %c0_5] : memref<8x128xf32, #tpu.memory_space<vmem>>, vector<8x128xf32>
    %8 = vector.shape_cast %6 : vector<16x128xf32> to vector<2x8x128xf32>
    %cst = arith.constant dense<0.000000e+00> : vector<8x128xf32>
    %9 = vector.multi_reduction <add>, %8, %cst [0] : vector<2x8x128xf32> to vector<8x128xf32>
    %10 = arith.addf %7, %9 : vector<8x128xf32>
    %c0_6 = arith.constant 0 : index
    %c0_7 = arith.constant 0 : index
    %11 = vector.load %arg3[%c0_6, %c0_7] : memref<8x128xf32, #tpu.memory_space<vmem>>, vector<8x128xf32>
    tpu.vector_store %arg3[%c0_6, %c0_7], %10 {strides = array<i32>} : memref<8x128xf32, #tpu.memory_space<vmem>>, vector<8x128xf32>,
    return
  }
  func.func @transform_0(%arg0: i32) -> (i32, i32) {
    %c0_i32 = arith.constant 0 : i32
    %c0_i32_0 = arith.constant 0 : i32
    return %arg0, %c0_i32 : i32, i32
  }
  func.func @transform_1(%arg0: i32) -> (i32, i32) {
    %c0_i32 = arith.constant 0 : i32
    %c0_i32_0 = arith.constant 0 : i32
    return %arg0, %c0_i32 : i32, i32
  }
  func.func @transform_2(%arg0: i32) -> (i32, i32) {
    %c0_i32 = arith.constant 0 : i32
    %c0_i32_0 = arith.constant 0 : i32
    %c0_i32_1 = arith.constant 0 : i32
    return %c0_i32, %c0_i32_0 : i32, i32
  }
}

</mosaic_0001>

<llo_original>
// kernel: _psnr_value.1
$region0: #{_psnr_value.1}
  #allocation0 [shape = 'u32[]', space=smem, size = 0x4, offset = 0x4, fixed_abs, tag = 'smem constant byte address 0x4 - core index']
  #allocation1 [shape = 'u32[144,128]{1,0:T(1,128)}', space=vmem, size = 0x12000, scoped, tag = 'internal scratch']
  %s0 = inlined_call_operand.vmem [shape: f32[16,128], index: 0, kind: input, shape index: {}]
  %s1 = inlined_call_operand.vmem [shape: f32[16,128], index: 1, kind: input, shape index: {}]
  %s2 = inlined_call_operand.vmem [shape: f32[8,128], index: 2, kind: output, shape index: {}]
  %s3 = sld [smem:[#allocation0]]
  $region22: #{_psnr_value.1} parent=0
    _
  %s5 = ssub.s32 1, %s3
  %s6 = scalar_select 0, %s5, %s3
  // Predicated region
  $region2: #{_psnr_value.1} parent=0 // pred_check
    _
  $region3: #{_psnr_value.1} parent=0 // pred_check_branch
    %8 = sbr.rel (0) target = $region5
  $region4: #{_psnr_value.1} parent=0 // pred_region
    _
  $region5: #{_psnr_value.1} parent=0 // pred_fallthru
    _
  // Predicated region
  $region6: #{_psnr_value.1} parent=0 // pred_check
    _
  $region7: #{_psnr_value.1} parent=0 // pred_check_branch
    %10 = sbr.rel (0) target = $region9
  $region8: #{_psnr_value.1} parent=0 // pred_region
    _
  $region9: #{_psnr_value.1} parent=0 // pred_fallthru
    _
  %p11 = scmp.eq.s32.totalorder 0, 0
  // Predicated region
  $region10: #{_psnr_value.1} parent=0 // pred_check
    %p12 = pneg %p11
  $region11: #{_psnr_value.1} parent=0 // pred_check_branch
    %14 = sbr.rel (%p12) target = $region13
  $region12: #{_psnr_value.1} parent=0 // pred_region
    %15 = vst [vmem:[%s2] sm:$0xff] 0.0
  $region13: #{_psnr_value.1} parent=0 // pred_fallthru
    _
  %v16 = vld [vmem:[%s0] sm:$0xff]
  %v17 = vld [vmem:[%s0 + $0x8] sm:$0xff]
  %v18 = vld [vmem:[%s1] sm:$0xff]
  %v19 = vld [vmem:[%s1 + $0x8] sm:$0xff]
  %v20 = vsub.f32 %v16, %v18
  %v21 = vsub.f32 %v17, %v19
  %v22 = vmul.f32 %v20, %v20
  %v23 = vmul.f32 %v21, %v21
  %v24 = vld [vmem:[%s2] sm:$0xff]
  %v25 = vadd.f32 %v22, %v23
  %v26 = vadd.f32 %v24, %v25
  %27 = vst [vmem:[%s2] sm:$0xff] %v26
  // Predicated region
  $region14: #{_psnr_value.1} parent=0 // pred_check
    _
  $region15: #{_psnr_value.1} parent=0 // pred_check_branch
    %29 = sbr.rel (0) target = $region17
  $region16: #{_psnr_value.1} parent=0 // pred_region
    _
  $region17: #{_psnr_value.1} parent=0 // pred_fallthru
    _
  // Predicated region
  $region18: #{_psnr_value.1} parent=0 // pred_check
    _
  $region19: #{_psnr_value.1} parent=0 // pred_check_branch
    %31 = sbr.rel (0) target = $region21
  $region20: #{_psnr_value.1} parent=0 // pred_region
    _
  $region21: #{_psnr_value.1} parent=0 // pred_fallthru
    _

</llo_original>
